<compile_context>
chip_gen: v7x
topology: tpu7x:2x2x1
jax: 0.10.0
libtpu: 0.0.40
codegen_flags: <defaults>
</compile_context>

<pallas_src>
import math
import jax
import jax.numpy as jnp
from jax.experimental import pallas as pl
from jax.experimental.pallas import tpu as pltpu

# ---------------- small synthetic VideoMAE-base analog config ----------------
B       = 2          # batch (clips)
T       = 4          # num_frames
C       = 3          # channels
IMG     = 16         # image size
PATCH   = 8          # spatial patch size
TUBELET = 2          # temporal tubelet size
HID     = 32         # hidden_size
HEADS   = 4          # attention heads
DH      = HID // HEADS
LAYERS  = 2          # encoder layers
INTER   = 64         # MLP intermediate size
EPS     = 1e-12      # VideoMAE layer_norm_eps

NT    = T // TUBELET                       # temporal patches
NS    = (IMG // PATCH) ** 2                # spatial patches
N     = NT * NS                            # tokens per clip
BN    = B * N
PDIM  = C * TUBELET * PATCH * PATCH        # flattened tubelet dim
SCALE = 1.0 / math.sqrt(DH)

VEC_ROWS = 8                                        # packed small-vector rows (sublane pad)
VEC_W    = ((max(HID, INTER) + 127) // 128) * 128   # lane-dense width (128 here)


# ------------------------------- kernel bodies --------------------------------
def _ln(x, g, b):
    mu = jnp.mean(x, axis=-1, keepdims=True)
    var = jnp.mean((x - mu) ** 2, axis=-1, keepdims=True)
    return (x - mu) * jax.lax.rsqrt(var + EPS) * g + b


def _embed_kernel(xp_ref, pe_w_ref, pe_b_ref, pos_ref, o_ref):
    # tubelet (Conv3d) patch embedding as a GEMM + sinusoid position embedding.
    emb = jnp.dot(xp_ref[...], pe_w_ref[...], preferred_element_type=jnp.float32)
    o_ref[...] = emb + pe_b_ref[...] + pos_ref[...]


def _encoder_kernel(emb_ref, vec_ref, bq_ref, wq_ref, wk_ref, wv_ref,
                    wo_ref, w1_ref, w2_ref, o_ref):
    l = pl.program_id(1)

    # layer 0 of each clip: initialize the VMEM-resident residual stream.
    @pl.when(l == 0)
    def _():
        o_ref[...] = emb_ref[...]

    x = o_ref[...]                                      # (N, HID) residual, f32

    vec = vec_ref[0]                                    # (VEC_ROWS, VEC_W) packed vectors
    ln1g, ln1b = vec[0:1, :HID], vec[1:2, :HID]
    ln2g, ln2b = vec[2:3, :HID], vec[3:4, :HID]
    bo,   b2   = vec[4:5, :HID], vec[5:6, :HID]         # bo already includes bv @ Wo fold
    b1         = vec[6:7, :INTER]

    # ------------- pre-LN multi-head self-attention (batched heads) -------------
    h = _ln(x, ln1g, ln1b).astype(jnp.bfloat16)          # (N, HID)
    hB = jnp.broadcast_to(h, (HEADS, N, HID))            # leading-batch lhs for head dots
    q = jnp.einsum("hnk,hkd->hnd", hB, wq_ref[0], preferred_element_type=jnp.float32)
    q = (q + bq_ref[0]) * SCALE                          # q bias (VideoMAE k has no bias)
    k = jnp.einsum("hnk,hkd->hnd", hB, wk_ref[0], preferred_element_type=jnp.float32)
    v = jnp.einsum("hnk,hkd->hnd", hB, wv_ref[0], preferred_element_type=jnp.float32)

    s = jnp.einsum("hqd,hkd->hqk", q.astype(jnp.bfloat16), k.astype(jnp.bfloat16),
                   preferred_element_type=jnp.float32)   # (HEADS, N, N)
    s = s - jnp.max(s, axis=-1, keepdims=True)
    p = jnp.exp(s)
    p = p / jnp.sum(p, axis=-1, keepdims=True)           # exact division (keeps bv->bo fold exact)

    c = jnp.einsum("hqk,hkd->hqd", p.astype(jnp.bfloat16), v.astype(jnp.bfloat16),
                   preferred_element_type=jnp.float32)   # (HEADS, N, DH)
    # per-head output projection; summing heads == concat-heads @ Wo (no redundant FLOPs)
    po = jnp.einsum("hqd,hdk->hqk", c.astype(jnp.bfloat16), wo_ref[0],
                    preferred_element_type=jnp.float32)  # (HEADS, N, HID)
    attn = po[0]
    for hh in range(1, HEADS):
        attn = attn + po[hh]
    x = x + attn + bo

    # ----------------------------------- pre-LN MLP ------------------------------
    h2 = _ln(x, ln2g, ln2b).astype(jnp.bfloat16)
    m = jnp.dot(h2, w1_ref[0], preferred_element_type=jnp.float32) + b1
    # TODO(synk): HF VideoMAE uses exact erf GELU; tanh approximation kept here
    # (exact erf has no guaranteed Mosaic lowering).
    m = jax.nn.gelu(m, approximate=True).astype(jnp.bfloat16)
    m = jnp.dot(m, w2_ref[0], preferred_element_type=jnp.float32) + b2

    o_ref[...] = x + m


# ------------------------------- glue / params ---------------------------------
def extract_tubelets(x):
    # x: (B, T, C, H, W) -> (B*N, PDIM); patch vector ordered (C, dt, dh, dw) to match
    # PyTorch Conv3d weight flattening (hidden, C, tubelet, p, p).
    xb = x.transpose(0, 2, 1, 3, 4)                                  # (B,C,T,H,W)
    xb = xb.reshape(B, C, NT, TUBELET, IMG // PATCH, PATCH, IMG // PATCH, PATCH)
    xb = xb.transpose(0, 2, 4, 6, 1, 3, 5, 7)                        # (B,NT,Hp,Wp,C,tub,p,p)
    return xb.reshape(BN, PDIM)


def sinusoid_pos_embed(n, d):
    pos = jnp.arange(n, dtype=jnp.float32)[:, None]
    i = jnp.arange(d)[None, :]
    angle = pos / jnp.power(10000.0, (2 * (i // 2)).astype(jnp.float32) / d)
    return jnp.where(i % 2 == 0, jnp.sin(angle), jnp.cos(angle)).astype(jnp.float32)


def init_params(key):
    def nrm(k, shape, std=0.02):
        return (std * jax.random.normal(k, shape)).astype(jnp.float32)

    npl = 11
    keys = jax.random.split(key, 2 + npl * LAYERS)
    conv_w = nrm(keys[0], (HID, C, TUBELET, PATCH, PATCH))           # Conv3d weight
    pe_w = conv_w.reshape(HID, PDIM).T                               # (PDIM, HID)
    pe_b = nrm(keys[1], (1, HID))

    wq_h, wk_h, wv_h, wo_h, bq_h, w1s, w2s, vecs = [], [], [], [], [], [], [], []
    for l in range(LAYERS):
        kk = keys[2 + npl * l: 2 + npl * (l + 1)]
        wq = nrm(kk[0], (HID, HID)); bq = nrm(kk[1], (HID,))
        wk = nrm(kk[2], (HID, HID))                                  # key has no bias (VideoMAE)
        wv = nrm(kk[3], (HID, HID)); bv = nrm(kk[4], (HID,))
        wo = nrm(kk[5], (HID, HID)); bo = nrm(kk[6], (HID,))
        w1 = nrm(kk[7], (HID, INTER)); b1 = nrm(kk[8], (INTER,))
        w2 = nrm(kk[9], (INTER, HID)); b2 = nrm(kk[10], (HID,))

        # per-head weight layout (all in-kernel indexing is on leading axes only)
        wq_h.append(wq.reshape(HID, HEADS, DH).transpose(1, 0, 2))   # (HEADS, HID, DH)
        wk_h.append(wk.reshape(HID, HEADS, DH).transpose(1, 0, 2))
        wv_h.append(wv.reshape(HID, HEADS, DH).transpose(1, 0, 2))
        wo_h.append(wo.reshape(HEADS, DH, HID))                      # (HEADS, DH, HID)
        bq_h.append(bq.reshape(HEADS, 1, DH))

        # pack the 8 small per-layer vectors into one lane-dense tile (1 DMA / layer)
        vec = jnp.zeros((VEC_ROWS, VEC_W), jnp.float32)
        vec = vec.at[0, :HID].set(1.0)                               # ln1 gamma
        vec = vec.at[2, :HID].set(1.0)                               # ln2 gamma
        vec = vec.at[4, :HID].set(bo + bv @ wo)                      # exact value-bias fold
        vec = vec.at[5, :HID].set(b2)
        vec = vec.at[6, :INTER].set(b1)
        vecs.append(vec)
        w1s.append(w1); w2s.append(w2)

    st = lambda xs, dt: jnp.stack(xs, 0).astype(dt)
    return {
        "pe_w": pe_w.astype(jnp.bfloat16),
        "pe_b": pe_b,
        "pos": sinusoid_pos_embed(N, HID),
        "vecs": st(vecs, jnp.float32),
        "bq_h": st(bq_h, jnp.float32),
        "wq_h": st(wq_h, jnp.bfloat16),
        "wk_h": st(wk_h, jnp.bfloat16),
        "wv_h": st(wv_h, jnp.bfloat16),
        "wo_h": st(wo_h, jnp.bfloat16),
        "w1":   st(w1s, jnp.bfloat16),
        "w2":   st(w2s, jnp.bfloat16),
    }


def vivit_forward(x, params):
    xp = extract_tubelets(x).astype(jnp.bfloat16)        # host-side im2col, bf16 in HBM

    # --- prologue: patch embedding (so xp/pe_w/pos are not VMEM-resident later) ---
    emb = pl.pallas_call(
        _embed_kernel,
        out_shape=jax.ShapeDtypeStruct((BN, HID), jnp.float32),
        grid=(B,),
        in_specs=[
            pl.BlockSpec((N, PDIM), lambda b: (b, 0)),
            pl.BlockSpec((PDIM, HID), lambda b: (0, 0)),
            pl.BlockSpec((1, HID), lambda b: (0, 0)),
            pl.BlockSpec((N, HID), lambda b: (0, 0)),
        ],
        out_specs=pl.BlockSpec((N, HID), lambda b: (b, 0)),
        compiler_params=pltpu.CompilerParams(
            dimension_semantics=("parallel",),
            vmem_limit_bytes=32 * 1024 * 1024,
        ),
    )(xp, params["pe_w"], params["pe_b"], params["pos"])

    # --- encoder: grid (clip, layer); residual stream resident in VMEM per clip ---
    layer_args = [params[k] for k in
                  ("vecs", "bq_h", "wq_h", "wk_h", "wv_h", "wo_h", "w1", "w2")]

    def layer_spec(a):
        nd = a.ndim
        return pl.BlockSpec((1,) + a.shape[1:],
                            lambda b, l, _nd=nd: (l,) + (0,) * (_nd - 1))

    out = pl.pallas_call(
        _encoder_kernel,
        out_shape=jax.ShapeDtypeStruct((BN, HID), jnp.float32),
        grid=(B, LAYERS),
        in_specs=[pl.BlockSpec((N, HID), lambda b, l: (b, 0))]
                 + [layer_spec(a) for a in layer_args],
        out_specs=pl.BlockSpec((N, HID), lambda b, l: (b, 0)),
        compiler_params=pltpu.CompilerParams(
            # clip axis parallel (v7x 2 TCs); layer axis is the sequential carry.
            dimension_semantics=("parallel", "arbitrary"),
            # toy sizes fit easily; raise per generation at real VideoMAE dims
            # (~48 MiB budget on v7x, ~100 MiB on v5e/v6e) together with row/key-block tiling.
            vmem_limit_bytes=32 * 1024 * 1024,
        ),
    )(emb, *layer_args)
    return out.reshape(B, N, HID)                        # == hidden_states[-1]


# -------------------- pure-JAX reference (f32) for validation --------------------
def vivit_reference(x, p):
    f32 = lambda a: jnp.asarray(a, jnp.float32)

    def ln(z, g, b):
        mu = z.mean(-1, keepdims=True)
        var = ((z - mu) ** 2).mean(-1, keepdims=True)
        return (z - mu) * jax.lax.rsqrt(var + EPS) * g + b

    xp = extract_tubelets(x)
    emb = xp @ f32(p["pe_w"]) + p["pe_b"] + jnp.tile(p["pos"], (B, 1))
    xs = emb.reshape(B, N, HID)
    for l in range(LAYERS):
        vec = p["vecs"][l]
        h = ln(xs, vec[0, :HID], vec[1, :HID])
        q = (jnp.einsum("bnk,hkd->bhnd", h, f32(p["wq_h"][l])) + p["bq_h"][l][None]) * SCALE
        k = jnp.einsum("bnk,hkd->bhnd", h, f32(p["wk_h"][l]))
        vv = jnp.einsum("bnk,hkd->bhnd", h, f32(p["wv_h"][l]))
        s = jnp.einsum("bhqd,bhkd->bhqk", q, k)
        pr = jax.nn.softmax(s, axis=-1)
        c = jnp.einsum("bhqk,bhkd->bhqd", pr, vv)
        attn = jnp.einsum("bhqd,hdk->bqk", c, f32(p["wo_h"][l])) + vec[4, :HID]
        xs = xs + attn
        h2 = ln(xs, vec[2, :HID], vec[3, :HID])
        m = h2 @ f32(p["w1"][l]) + vec[6, :INTER]
        m = jax.nn.gelu(m, approximate=True)
        m = m @ f32(p["w2"][l]) + vec[5, :HID]
        xs = xs + m
    return xs


# ------------------------------------- main --------------------------------------
if __name__ == "__main__":
    key = jax.random.PRNGKey(0)
    kx, kp = jax.random.split(key)
    x = jax.random.normal(kx, (B, T, C, IMG, IMG), jnp.float32)
    params = init_params(kp)

    out = jax.block_until_ready(vivit_forward(x, params))
    assert out.shape == (B, N, HID), out.shape

    ref = vivit_reference(x, params)
    err = float(jnp.max(jnp.abs(out - ref)))
    assert jnp.allclose(out, ref, atol=5e-2, rtol=5e-2), err  # bf16-weight/activation tolerance
    print("KERNEL_OK")
</pallas_src>

<mosaic_0001>
module attributes {stable_mosaic.version = 11 : i64} {
  func.func @_embed_kernel(%arg0: i32, %arg1: memref<8x384xbf16, #tpu.memory_space<vmem>>, %arg2: memref<384x32xbf16, #tpu.memory_space<vmem>>, %arg3: memref<1x32xf32, #tpu.memory_space<vmem>>, %arg4: memref<8x32xf32, #tpu.memory_space<vmem>>, %arg5: memref<8x32xf32, #tpu.memory_space<vmem>>) attributes {dimension_semantics = [#tpu.dimension_semantics<parallel>], iteration_bounds = array<i64: 2>, scalar_prefetch = 0 : i64, scratch_operands = 0 : i64, tpu.core_type = #tpu.core_type<tc>, window_params = [{transform_indices = @transform_0, window_bounds = array<i64: 8, 384>}, {pipeline_mode = #tpu.pipeline_mode<synchronous>, transform_indices = @transform_1, window_bounds = array<i64: 384, 32>}, {pipeline_mode = #tpu.pipeline_mode<synchronous>, transform_indices = @transform_2, window_bounds = array<i64: 1, 32>}, {pipeline_mode = #tpu.pipeline_mode<synchronous>, transform_indices = @transform_3, window_bounds = array<i64: 8, 32>}, {transform_indices = @transform_4, window_bounds = array<i64: 8, 32>}]} {
    %c0 = arith.constant 0 : index
    %c0_0 = arith.constant 0 : index
    %0 = vector.load %arg1[%c0, %c0_0] : memref<8x384xbf16, #tpu.memory_space<vmem>>, vector<8x384xbf16>
    %c0_1 = arith.constant 0 : index
    %c0_2 = arith.constant 0 : index
    %1 = vector.load %arg2[%c0_1, %c0_2] : memref<384x32xbf16, #tpu.memory_space<vmem>>, vector<384x32xbf16>
    %cst = arith.constant dense<0.000000e+00> : vector<8x32xf32>
    %2 = tpu.matmul %0, %1, %cst {dimension_numbers = #tpu.dot_dimension_numbers<[1], [0], [0], [1], [0, 0, 1, 1], [], []>} : vector<8x384xbf16>, vector<384x32xbf16>, vector<8x32xf32> -> vector<8x32xf32>
    %c0_3 = arith.constant 0 : index
    %c0_4 = arith.constant 0 : index
    %3 = vector.load %arg3[%c0_3, %c0_4] : memref<1x32xf32, #tpu.memory_space<vmem>>, vector<1x32xf32>
    %4 = vector.broadcast %3 : vector<1x32xf32> to vector<8x32xf32>
    %5 = arith.addf %2, %4 : vector<8x32xf32>
    %c0_5 = arith.constant 0 : index
    %c0_6 = arith.constant 0 : index
    %6 = vector.load %arg4[%c0_5, %c0_6] : memref<8x32xf32, #tpu.memory_space<vmem>>, vector<8x32xf32>
    %7 = arith.addf %5, %6 : vector<8x32xf32>
    %c0_7 = arith.constant 0 : index
    %c0_8 = arith.constant 0 : index
    %8 = vector.load %arg5[%c0_7, %c0_8] : memref<8x32xf32, #tpu.memory_space<vmem>>, vector<8x32xf32>
    tpu.vector_store %arg5[%c0_7, %c0_8], %7 {strides = array<i32>} : memref<8x32xf32, #tpu.memory_space<vmem>>, vector<8x32xf32>,
    return
  }
  func.func @transform_0(%arg0: i32) -> (i32, i32) {
    %c0_i32 = arith.constant 0 : i32
    %c0_i32_0 = arith.constant 0 : i32
    return %arg0, %c0_i32 : i32, i32
  }
  func.func @transform_1(%arg0: i32) -> (i32, i32) {
    %c0_i32 = arith.constant 0 : i32
    %c0_i32_0 = arith.constant 0 : i32
    %c0_i32_1 = arith.constant 0 : i32
    return %c0_i32, %c0_i32_0 : i32, i32
  }
  func.func @transform_2(%arg0: i32) -> (i32, i32) {
    %c0_i32 = arith.constant 0 : i32
    %c0_i32_0 = arith.constant 0 : i32
    %c0_i32_1 = arith.constant 0 : i32
    return %c0_i32, %c0_i32_0 : i32, i32
  }
  func.func @transform_3(%arg0: i32) -> (i32, i32) {
    %c0_i32 = arith.constant 0 : i32
    %c0_i32_0 = arith.constant 0 : i32
    %c0_i32_1 = arith.constant 0 : i32
    return %c0_i32, %c0_i32_0 : i32, i32
  }
  func.func @transform_4(%arg0: i32) -> (i32, i32) {
    %c0_i32 = arith.constant 0 : i32
    %c0_i32_0 = arith.constant 0 : i32
    return %arg0, %c0_i32 : i32, i32
  }
}

</mosaic_0001>

<llo_original>
// kernel: tpu_custom_call.1
$region0: #{tpu_custom_call.1}
  #allocation0 [shape = 'u32[]', space=smem, size = 0x4, offset = 0x4, fixed_abs, tag = 'smem constant byte address 0x4 - core index']
  #allocation1 [shape = 'u32[144,128]{1,0:T(1,128)}', space=vmem, size = 0x12000, scoped, tag = 'internal scratch']
  %s0 = inlined_call_operand.vmem [shape: bf16[16,384], index: 0, kind: input, shape index: {}]
  %s1 = inlined_call_operand.vmem [shape: bf16[384,32], index: 1, kind: input, shape index: {}]
  %s2 = inlined_call_operand.vmem [shape: f32[1,32], index: 2, kind: input, shape index: {}]
  %s3 = inlined_call_operand.vmem [shape: f32[8,32], index: 3, kind: input, shape index: {}]
  %s4 = inlined_call_operand.hbm [shape: f32[16,32], index: 4, kind: output, shape index: {}]
  %s5 = sld [smem:[#allocation0]]
  $region49: #{tpu_custom_call.1} parent=0
    _
  %s7 = ssub.s32 1, %s5
  %s8 = scalar_select 0, %s7, %s5
  $region1: #{tpu_custom_call.1} parent=0
    #allocation2 [shape = 'u8[8192]{0}', space=vmem, size = 0x2000, scoped, tag = 'output window, operand 0']
    #allocation3 [shape = 's32[2]{0}', space=sflag, size = 0x8, scoped, tag = 'scoped memory for tpu_custom_call.1']
    %9 = vsyncpa [#allocation3], 0
    %s10 = scalar_lea.sflag [#allocation3], 1
    %11 = vsyncpa %s10, 0
    loop: start=0, step=1, limit=4
    $region2: #{tpu_custom_call.1} parent=1 // loop_pre_header
      _
    $region3: #{tpu_custom_call.1} parent=1 // loop_header
      %s13 = sphi 0, %s17
      %p14 = scmp.ge.s32.totalorder %s13, 4
      %s23 = sphi 0, %s25
      %s26 = sphi 0, %s23
      %s27 = sphi 0, %s26
      %s43 = sphi 0, %s27
      %s47 = sphi 0, %s47
      %s49 = sphi 0, %s47
      %s50 = sphi 0, %s49
      %s64 = sphi 0, %s50
      %s68 = sphi 0, %s68
      %s70 = sphi 0, %s68
      %s71 = sphi 0, %s70
      %s85 = sphi 0, %s71
      %s89 = sphi 0, %s89
      %s91 = sphi 0, %s89
      %s92 = sphi 0, %s91
      %s106 = sphi 0, %s92
      %s112 = sphi 0, %s114
      %s115 = sphi 0, %s112
      %s116 = sphi 0, %s115
      %s132 = sphi 0, %s116
    $region4: #{tpu_custom_call.1} parent=1 // loop_header_branch
      %16 = sbr.rel (%p14) target = $region8
    $region5: #{tpu_custom_call.1} parent=1 // loop_body
      %s18 = ssub.s32 %s13, 1
      %s19 = ssub.s32 %s13, 2
      %s20 = sadd.s32 %s13, 1
      %s21 = ssub.s32 %s13, %s20
      %p22 = scmp.eq.s32.totalorder %s21, 0
      %s24 = sadd.s32 %s23, 1
      %s25 = scalar_select %p22, %s23, %s24
      %p28 = pneg %p22
      %p29 = scmp.eq.s32.totalorder %s13, 1
      %p30 = por %p28, %p29
      %p31 = scmp.ne.s32.totalorder %s23, %s26
      %p32 = scmp.eq.s32.totalorder %s13, 0
      %p33 = por %p31, %p32
      %p34 = scmp.ne.s32.totalorder %s23, %s26
      %p35 = scmp.eq.s32.totalorder %s18, 1
      %p36 = por %p34, %p35
      %p37 = scmp.ne.s32.totalorder %s26, %s27
      %p38 = scmp.eq.s32.totalorder %s18, 0
      %p39 = por %p37, %p38
      %p40 = scmp.ne.s32.totalorder %s26, %s27
      %p41 = scmp.eq.s32.totalorder %s19, 1
      %p42 = por %p40, %p41
      %p44 = scmp.ne.s32.totalorder %s27, %s43
      %p45 = scmp.eq.s32.totalorder %s19, 0
      %p46 = por %p44, %p45
      %s48 = sadd.s32 %s47, 1
      %p51 = scmp.eq.s32.totalorder %s13, 1
      %p52 = scmp.ne.s32.totalorder %s47, %s49
      %p53 = scmp.eq.s32.totalorder %s13, 0
      %p54 = por %p52, %p53
      %p55 = scmp.ne.s32.totalorder %s47, %s49
      %p56 = scmp.eq.s32.totalorder %s18, 1
      %p57 = por %p55, %p56
      %p58 = scmp.ne.s32.totalorder %s49, %s50
      %p59 = scmp.eq.s32.totalorder %s18, 0
      %p60 = por %p58, %p59
      %p61 = scmp.ne.s32.totalorder %s49, %s50
      %p62 = scmp.eq.s32.totalorder %s19, 1
      %p63 = por %p61, %p62
      %p65 = scmp.ne.s32.totalorder %s50, %s64
      %p66 = scmp.eq.s32.totalorder %s19, 0
      %p67 = por %p65, %p66
      %s69 = sadd.s32 %s68, 1
      %p72 = scmp.eq.s32.totalorder %s13, 1
      %p73 = scmp.ne.s32.totalorder %s68, %s70
      %p74 = scmp.eq.s32.totalorder %s13, 0
      %p75 = por %p73, %p74
      %p76 = scmp.ne.s32.totalorder %s68, %s70
      %p77 = scmp.eq.s32.totalorder %s18, 1
      %p78 = por %p76, %p77
      %p79 = scmp.ne.s32.totalorder %s70, %s71
      %p80 = scmp.eq.s32.totalorder %s18, 0
      %p81 = por %p79, %p80
      %p82 = scmp.ne.s32.totalorder %s70, %s71
      %p83 = scmp.eq.s32.totalorder %s19, 1
      %p84 = por %p82, %p83
      %p86 = scmp.ne.s32.totalorder %s71, %s85
      %p87 = scmp.eq.s32.totalorder %s19, 0
      %p88 = por %p86, %p87
      %s90 = sadd.s32 %s89, 1
      %p93 = scmp.eq.s32.totalorder %s13, 1
      %p94 = scmp.ne.s32.totalorder %s89, %s91
      %p95 = scmp.eq.s32.totalorder %s13, 0
      %p96 = por %p94, %p95
      %p97 = scmp.ne.s32.totalorder %s89, %s91
      %p98 = scmp.eq.s32.totalorder %s18, 1
      %p99 = por %p97, %p98
      %p100 = scmp.ne.s32.totalorder %s91, %s92
      %p101 = scmp.eq.s32.totalorder %s18, 0
      %p102 = por %p100, %p101
      %p103 = scmp.ne.s32.totalorder %s91, %s92
      %p104 = scmp.eq.s32.totalorder %s19, 1
      %p105 = por %p103, %p104
      %p107 = scmp.ne.s32.totalorder %s92, %s106
      %p108 = scmp.eq.s32.totalorder %s19, 0
      %p109 = por %p107, %p108
      %s110 = ssub.s32 %s13, %s20
      %p111 = scmp.eq.s32.totalorder %s110, 0
      %s113 = sadd.s32 %s112, 1
      %s114 = scalar_select %p111, %s112, %s113
      %p117 = pneg %p111
      %p118 = scmp.eq.s32.totalorder %s13, 1
      %p119 = por %p117, %p118
      %p120 = scmp.ne.s32.totalorder %s112, %s115
      %p121 = scmp.eq.s32.totalorder %s13, 0
      %p122 = por %p120, %p121
      %p123 = scmp.ne.s32.totalorder %s112, %s115
      %p124 = scmp.eq.s32.totalorder %s18, 1
      %p125 = por %p123, %p124
      %p126 = scmp.ne.s32.totalorder %s115, %s116
      %p127 = scmp.eq.s32.totalorder %s18, 0
      %p128 = por %p126, %p127
      %p129 = scmp.ne.s32.totalorder %s115, %s116
      %p130 = scmp.eq.s32.totalorder %s19, 1
      %p131 = por %p129, %p130
      %p133 = scmp.ne.s32.totalorder %s116, %s132
      %p134 = scmp.eq.s32.totalorder %s19, 0
      %p135 = por %p133, %p134
      %p136 = scmp.le.s32.totalorder 1, %s13
      %p137 = scmp.lt.s32.totalorder %s13, 3
      %p138 = pnand %p136, %p137
      %p139 = pneg %p138
      // Predicated region
      $region9: #{tpu_custom_call.1} parent=5 // pred_check
        _
      $region10: #{tpu_custom_call.1} parent=5 // pred_check_branch
        %141 = sbr.rel (%p138) target = $region12
      $region11: #{tpu_custom_call.1} parent=5 // pred_region
        %s142 = ssub.s32 %s13, 1
        // Predicated region
        $region13: #{tpu_custom_call.1} parent=11 // pred_check
          %p143 = pneg %p60
        $region14: #{tpu_custom_call.1} parent=11 // pred_check_branch
          %145 = sbr.rel (%p143) target = $region16
        $region15: #{tpu_custom_call.1} parent=11 // pred_region
          _
        $region16: #{tpu_custom_call.1} parent=11 // pred_fallthru
          _
        // Predicated region
        $region17: #{tpu_custom_call.1} parent=11 // pred_check
          %p146 = pneg %p81
        $region18: #{tpu_custom_call.1} parent=11 // pred_check_branch
          %148 = sbr.rel (%p146) target = $region20
        $region19: #{tpu_custom_call.1} parent=11 // pred_region
          _
        $region20: #{tpu_custom_call.1} parent=11 // pred_fallthru
          _
        // Predicated region
        $region21: #{tpu_custom_call.1} parent=11 // pred_check
          %p149 = pneg %p102
        $region22: #{tpu_custom_call.1} parent=11 // pred_check_branch
          %151 = sbr.rel (%p149) target = $region24
        $region23: #{tpu_custom_call.1} parent=11 // pred_region
          _
        $region24: #{tpu_custom_call.1} parent=11 // pred_fallthru
          _
      $region12: #{tpu_custom_call.1} parent=5 // pred_fallthru
        _
      %p152 = scmp.lt.s32.totalorder %s13, 2
      // Predicated region
      $region25: #{tpu_custom_call.1} parent=5 // pred_check
        %p153 = pneg %p152
      $region26: #{tpu_custom_call.1} parent=5 // pred_check_branch
        %155 = sbr.rel (%p153) target = $region28
      $region27: #{tpu_custom_call.1} parent=5 // pred_region
        // Predicated region
        $region29: #{tpu_custom_call.1} parent=27 // pred_check
          %p156 = pneg %p33
        $region30: #{tpu_custom_call.1} parent=27 // pred_check_branch
          %158 = sbr.rel (%p156) target = $region32
        $region31: #{tpu_custom_call.1} parent=27 // pred_region
          %p159 = scmp.lt.s32.totalorder %s13, 1
          %s160 = scalar_select %p159, %s13, 1
          %s161 = smul.addr %s160, 3
          %s162 = smul.addr %s161, 4
          %s163 = scalar_lea.vmem %s0, %s162
        $region32: #{tpu_custom_call.1} parent=27 // pred_fallthru
          _
      $region28: #{tpu_custom_call.1} parent=5 // pred_fallthru
        _
      %p164 = scmp.le.s32.totalorder 1, %s13
      %p165 = scmp.lt.s32.totalorder %s13, 3
      %p166 = pnand %p164, %p165
      %p167 = pneg %p166
      // Predicated region
      $region33: #{tpu_custom_call.1} parent=5 // pred_check
        _
      $region34: #{tpu_custom_call.1} parent=5 // pred_check_branch
        %169 = sbr.rel (%p166) target = $region36
      $region35: #{tpu_custom_call.1} parent=5 // pred_region
        %s170 = ssub.s32 %s13, 1
        %p171 = scmp.lt.s32.totalorder %s18, 1
        %s172 = scalar_select %p171, %s18, 1
        %s173 = smul.addr %s172, 3
        %s174 = smul.addr %s173, 4
        %s175 = scalar_lea.vmem %s0, %s174
        %p176 = pneg %p39
        %p177 = pneg %p36
        %p178 = pneg %p60
        %p179 = pneg %p57
        %p180 = pneg %p81
        %p181 = pneg %p78
        %p182 = pneg %p102
        %p183 = pneg %p99
        %p184 = pneg %p128
        %p185 = pneg %p125
        %s186 = sand.u32 %s115, 1
        %s187 = scalar_lea.sflag [#allocation3], %s186
        %s188 = sand.u32 %s115, 1
        %s189 = smul.addr %s188, 8
        %s190 = scalar_lea.vmem [#allocation2], %s189
        %p191 = scmp.lt.s32.totalorder %s18, 1
        %s192 = scalar_select %p191, %s18, 1
        %s193 = smul.addr %s192, 3
        %s194 = smul.addr %s193, 4
        %s195 = scalar_lea.vmem %s0, %s194
        %v197 = vld [vmem:[%s195] sm:$0xff]
        %v198 = vld [vmem:[%s195 + $0x8] sm:$0xf]
        %v199 = vld [vmem:[%s1] sm:$0xf]
        %v200 = vld [vmem:[%s1 + $0x4] sm:$0xf]
        %v201 = vld [vmem:[%s1 + $0x8] sm:$0xf]
        %v202 = vld [vmem:[%s1 + $0xc] sm:$0xf]
        %v203 = vld [vmem:[%s1 + $0x10] sm:$0xf]
        %v204 = vld [vmem:[%s1 + $0x14] sm:$0xf]
        %v205 = vld [vmem:[%s1 + $0x18] sm:$0xf]
        %v206 = vld [vmem:[%s1 + $0x1c] sm:$0xf]
        %v207 = vld [vmem:[%s1 + $0x20] sm:$0xf]
        %v208 = vld [vmem:[%s1 + $0x24] sm:$0xf]
        %v209 = vld [vmem:[%s1 + $0x28] sm:$0xf]
        %v210 = vld [vmem:[%s1 + $0x2c] sm:$0xf]
        %v211 = vld [vmem:[%s1 + $0x30] sm:$0xf]
        %v212 = vld [vmem:[%s1 + $0x34] sm:$0xf]
        %v213 = vld [vmem:[%s1 + $0x38] sm:$0xf]
        %v214 = vld [vmem:[%s1 + $0x3c] sm:$0xf]
        %v215 = vld [vmem:[%s1 + $0x40] sm:$0xf]
        %v216 = vld [vmem:[%s1 + $0x44] sm:$0xf]
        %v217 = vld [vmem:[%s1 + $0x48] sm:$0xf]
        %v218 = vld [vmem:[%s1 + $0x4c] sm:$0xf]
        %v219 = vld [vmem:[%s1 + $0x50] sm:$0xf]
        %v220 = vld [vmem:[%s1 + $0x54] sm:$0xf]
        %v221 = vld [vmem:[%s1 + $0x58] sm:$0xf]
        %v222 = vld [vmem:[%s1 + $0x5c] sm:$0xf]
        %v223 = vld [vmem:[%s1 + $0x60] sm:$0xf]
        %v224 = vld [vmem:[%s1 + $0x64] sm:$0xf]
        %v225 = vld [vmem:[%s1 + $0x68] sm:$0xf]
        %v226 = vld [vmem:[%s1 + $0x6c] sm:$0xf]
        %v227 = vld [vmem:[%s1 + $0x70] sm:$0xf]
        %v228 = vld [vmem:[%s1 + $0x74] sm:$0xf]
        %v229 = vld [vmem:[%s1 + $0x78] sm:$0xf]
        %v230 = vld [vmem:[%s1 + $0x7c] sm:$0xf]
        %v231 = vld [vmem:[%s1 + $0x80] sm:$0xf]
        %v232 = vld [vmem:[%s1 + $0x84] sm:$0xf]
        %v233 = vld [vmem:[%s1 + $0x88] sm:$0xf]
        %v234 = vld [vmem:[%s1 + $0x8c] sm:$0xf]
        %v235 = vld [vmem:[%s1 + $0x90] sm:$0xf]
        %v236 = vld [vmem:[%s1 + $0x94] sm:$0xf]
        %v237 = vld [vmem:[%s1 + $0x98] sm:$0xf]
        %v238 = vld [vmem:[%s1 + $0x9c] sm:$0xf]
        %v239 = vld [vmem:[%s1 + $0xa0] sm:$0xf]
        %v240 = vld [vmem:[%s1 + $0xa4] sm:$0xf]
        %v241 = vld [vmem:[%s1 + $0xa8] sm:$0xf]
        %v242 = vld [vmem:[%s1 + $0xac] sm:$0xf]
        %v243 = vld [vmem:[%s1 + $0xb0] sm:$0xf]
        %v244 = vld [vmem:[%s1 + $0xb4] sm:$0xf]
        %v245 = vld [vmem:[%s1 + $0xb8] sm:$0xf]
        %v246 = vld [vmem:[%s1 + $0xbc] sm:$0xf]
        %v247 = vld [vmem:[%s2] sm:$0x1]
        %v249 = vlaneseq
        %v250 = vshrl.u32 %v249, 7
        %v251 = vsub.s32 0, %v250
        %v252 = vrot.slane %v247, %v251
        %v256 = vunpack.c.l.b16 %v197
        %v257 = vunpack.c.h.b16 %v197
        %v258 = vunpack.c.l.b16 %v198
        %v259 = vpack.c.b16 %v256, %v256
        %v260 = vpack.c.b16 %v257, %v257
        %v261 = vpack.c.b16 %v258, %v258
        %v313 = vunpack.c.l.b16 %v199
        %v314 = vunpack.c.l.b16 %v200
        %v315 = vunpack.c.l.b16 %v201
        %v316 = vunpack.c.l.b16 %v202
        %v317 = vunpack.c.l.b16 %v203
        %v318 = vunpack.c.l.b16 %v204
        %v319 = vunpack.c.l.b16 %v205
        %v320 = vunpack.c.l.b16 %v206
        %v321 = vunpack.c.l.b16 %v207
        %v322 = vunpack.c.l.b16 %v208
        %v323 = vunpack.c.l.b16 %v209
        %v324 = vunpack.c.l.b16 %v210
        %v325 = vunpack.c.l.b16 %v211
        %v326 = vunpack.c.l.b16 %v212
        %v327 = vunpack.c.l.b16 %v213
        %v328 = vunpack.c.l.b16 %v214
        %v329 = vunpack.c.l.b16 %v215
        %v330 = vunpack.c.l.b16 %v216
        %v331 = vunpack.c.l.b16 %v217
        %v332 = vunpack.c.l.b16 %v218
        %v333 = vunpack.c.l.b16 %v219
        %v334 = vunpack.c.l.b16 %v220
        %v335 = vunpack.c.l.b16 %v221
        %v336 = vunpack.c.l.b16 %v222
        %v337 = vunpack.c.l.b16 %v223
        %v338 = vunpack.c.l.b16 %v224
        %v339 = vunpack.c.l.b16 %v225
        %v340 = vunpack.c.l.b16 %v226
        %v341 = vunpack.c.l.b16 %v227
        %v342 = vunpack.c.l.b16 %v228
        %v343 = vunpack.c.l.b16 %v229
        %v344 = vunpack.c.l.b16 %v230
        %v345 = vunpack.c.l.b16 %v231
        %v346 = vunpack.c.l.b16 %v232
        %v347 = vunpack.c.l.b16 %v233
        %v348 = vunpack.c.l.b16 %v234
        %v349 = vunpack.c.l.b16 %v235
        %v350 = vunpack.c.l.b16 %v236
        %v351 = vunpack.c.l.b16 %v237
        %v352 = vunpack.c.l.b16 %v238
        %v353 = vunpack.c.l.b16 %v239
        %v354 = vunpack.c.l.b16 %v240
        %v355 = vunpack.c.l.b16 %v241
        %v356 = vunpack.c.l.b16 %v242
        %v357 = vunpack.c.l.b16 %v243
        %v358 = vunpack.c.l.b16 %v244
        %v359 = vunpack.c.l.b16 %v245
        %v360 = vunpack.c.l.b16 %v246
        %v361 = vpack.c.b16 %v314, %v313
        %v362 = vpack.c.b16 %v316, %v315
        %v363 = vpack.c.b16 %v318, %v317
        %v364 = vpack.c.b16 %v320, %v319
        %v365 = vpack.c.b16 %v322, %v321
        %v366 = vpack.c.b16 %v324, %v323
        %v367 = vpack.c.b16 %v326, %v325
        %v368 = vpack.c.b16 %v328, %v327
        %v369 = vpack.c.b16 %v330, %v329
        %v370 = vpack.c.b16 %v332, %v331
        %v371 = vpack.c.b16 %v334, %v333
        %v372 = vpack.c.b16 %v336, %v335
        %v373 = vpack.c.b16 %v338, %v337
        %v374 = vpack.c.b16 %v340, %v339
        %v375 = vpack.c.b16 %v342, %v341
        %v376 = vpack.c.b16 %v344, %v343
        %v377 = vpack.c.b16 %v346, %v345
        %v378 = vpack.c.b16 %v348, %v347
        %v379 = vpack.c.b16 %v350, %v349
        %v380 = vpack.c.b16 %v352, %v351
        %v381 = vpack.c.b16 %v354, %v353
        %v382 = vpack.c.b16 %v356, %v355
        %v383 = vpack.c.b16 %v358, %v357
        %v384 = vpack.c.b16 %v360, %v359
        %409 = vmatprep.subr.bf16.mxu0 0
        %410 = vmatpush1.bf16.msra.mxu0 %v361
        %411 = vmatprep.subr.bf16.mxu0 0
        %412 = vmatpush1.bf16.msra.mxu0 %v362
        %413 = vmatprep.subr.bf16.mxu0 0
        %414 = vmatpush1.bf16.msra.mxu0 %v363
        %415 = vmatprep.subr.bf16.mxu0 0
        %416 = vmatpush1.bf16.msra.mxu0 %v364
        %417 = vmatprep.subr.bf16.mxu0 0
        %418 = vmatpush1.bf16.msra.mxu0 %v365
        %419 = vmatprep.subr.bf16.mxu0 0
        %420 = vmatpush1.bf16.msra.mxu0 %v366
        %421 = vmatprep.subr.bf16.mxu0 0
        %422 = vmatpush1.bf16.msra.mxu0 %v367
        %423 = vmatprep.subr.bf16.mxu0 0
        %424 = vmatpush1.bf16.msra.mxu0 %v368
        %425 = vmatprep.subr.bf16.mxu0 0
        %426 = vmatpush1.bf16.msra.mxu0 %v369
        %427 = vmatprep.subr.bf16.mxu0 0
        %428 = vmatpush1.bf16.msra.mxu0 %v370
        %429 = vmatprep.subr.bf16.mxu0 0
        %430 = vmatpush1.bf16.msra.mxu0 %v371
        %431 = vmatprep.subr.bf16.mxu0 0
        %432 = vmatpush1.bf16.msra.mxu0 %v372
        %433 = vmatprep.subr.bf16.mxu0 0
        %434 = vmatpush1.bf16.msra.mxu0 %v373
        %435 = vmatprep.subr.bf16.mxu0 0
        %436 = vmatpush1.bf16.msra.mxu0 %v374
        %437 = vmatprep.subr.bf16.mxu0 0
        %438 = vmatpush1.bf16.msra.mxu0 %v375
        %439 = vmatprep.subr.bf16.mxu0 0
        %440 = vmatpush1.bf16.msra.mxu0 %v376
        %441 = vmatprep.mubr.bf16.mxu0 %v260
        %442 = vmatmul.mubr.bf16.gmra.mrb[0].mxu0 %v259
        %v443 = vpop.f32.mrb[0].mxu0
        %v444 = vadd.f32 %v252, %v443
        %v445 = vpop.f32.mrb[0].mxu0
        %v446 = vpop.f32.mrb[0].mxu0
        %v447 = vpop.f32.mrb[0].mxu0
        %448 = vdwg.mxu0
        %449 = vmatprep.subr.bf16.mxu0 0
        %450 = vmatpush1.bf16.msra.mxu0 %v377
        %451 = vmatprep.subr.bf16.mxu0 0
        %452 = vmatpush1.bf16.msra.mxu0 %v378
        %453 = vmatprep.subr.bf16.mxu0 0
        %454 = vmatpush1.bf16.msra.mxu0 %v379
        %455 = vmatprep.subr.bf16.mxu0 0
        %456 = vmatpush1.bf16.msra.mxu0 %v380
        %457 = vmatprep.subr.bf16.mxu0 0
        %458 = vmatpush1.bf16.msra.mxu0 %v381
        %459 = vmatprep.subr.bf16.mxu0 0
        %460 = vmatpush1.bf16.msra.mxu0 %v382
        %461 = vmatprep.subr.bf16.mxu0 0
        %462 = vmatpush1.bf16.msra.mxu0 %v383
        %463 = vmatprep.subr.bf16.mxu0 0
        %464 = vmatpush1.bf16.msra.mxu0 %v384
        %465 = vmatprep.subr.bf16.mxu0 0
        %466 = vmatpush1.bf16.msra.mxu0 0
        %467 = vmatprep.subr.bf16.mxu0 0
        %468 = vmatpush1.bf16.msra.mxu0 0
        %469 = vmatprep.subr.bf16.mxu0 0
        %470 = vmatpush1.bf16.msra.mxu0 0
        %471 = vmatprep.subr.bf16.mxu0 0
        %472 = vmatpush1.bf16.msra.mxu0 0
        %473 = vmatprep.subr.bf16.mxu0 0
        %474 = vmatpush1.bf16.msra.mxu0 0
        %475 = vmatprep.subr.bf16.mxu0 0
        %476 = vmatpush1.bf16.msra.mxu0 0
        %477 = vmatprep.subr.bf16.mxu0 0
        %478 = vmatpush1.bf16.msra.mxu0 0
        %479 = vmatprep.subr.bf16.mxu0 0
        %480 = vmatpush1.bf16.msra.mxu0 0
        %481 = vmatprep.mubr.bf16.mxu0 0
        %482 = vmatmul.mubr.bf16.gmra.mrb[0].mxu0 %v261
        %v483 = vpop.f32.mrb[0].mxu0
        %v484 = vadd.f32 %v444, %v483
        %v485 = vpop.f32.mrb[0].mxu0
        %v486 = vpop.f32.mrb[0].mxu0
        %v487 = vpop.f32.mrb[0].mxu0
        %488 = vdwg.mxu0
        %v489 = vld [vmem:[%s3] sm:$0xff]
        %v490 = vadd.f32 %v484, %v489
        %vm491 = vcmask 261120
        %492 = vst.msk [vmem:[%s190] sm:$0xff] %vm491, %v490
        %s493 = sand.u32 %s115, 1
        %s494 = scalar_lea.sflag [#allocation3], %s493
        %s495 = sand.u32 %s115, 1
        %s496 = smul.addr %s495, 8
        %s497 = scalar_lea.vmem [#allocation2], %s496
        // Predicated region
        $region37: #{tpu_custom_call.1} parent=35 // pred_check
          %p498 = pneg %p125
        $region38: #{tpu_custom_call.1} parent=35 // pred_check_branch
          %500 = sbr.rel (%p498) target = $region40
        $region39: #{tpu_custom_call.1} parent=35 // pred_region
          %s502 = ssub.s32 128, 128
          %503 = vsyncadd %s494, %s502
          %s504 = smul.addr %s18, 128
          %s505 = scalar_lea.hbm %s4, %s504
          %s507 = sshll.u32 %s497, 4
          %s508 = int_to_ptr.vmem [resolvable:$true] %s507
          %510 = dma.vmem_to_hbm [thread:$0]  %s508, 128, %s505, %s494
        $region40: #{tpu_custom_call.1} parent=35 // pred_fallthru
          _
      $region36: #{tpu_custom_call.1} parent=5 // pred_fallthru
        _
      %p511 = scmp.le.s32.totalorder 2, %s13
      // Predicated region
      $region41: #{tpu_custom_call.1} parent=5 // pred_check
        %p512 = pneg %p511
      $region42: #{tpu_custom_call.1} parent=5 // pred_check_branch
        %514 = sbr.rel (%p512) target = $region44
      $region43: #{tpu_custom_call.1} parent=5 // pred_region
        %s515 = ssub.s32 %s13, 2
        // Predicated region
        $region45: #{tpu_custom_call.1} parent=43 // pred_check
          %p516 = pneg %p131
        $region46: #{tpu_custom_call.1} parent=43 // pred_check_branch
          %518 = sbr.rel (%p516) target = $region48
        $region47: #{tpu_custom_call.1} parent=43 // pred_region
          %s519 = sand.u32 %s116, 1
          %s520 = scalar_lea.sflag [#allocation3], %s519
          %s521 = sand.u32 %s116, 1
          %s522 = smul.addr %s521, 8
          %s523 = scalar_lea.vmem [#allocation2], %s522
          %524 = dma.done %s520, 128
        $region48: #{tpu_custom_call.1} parent=43 // pred_fallthru
          _
      $region44: #{tpu_custom_call.1} parent=5 // pred_fallthru
        _
    $region6: #{tpu_custom_call.1} parent=1 // loop_footer
      %s17 = sadd.s32 1, %s13
    $region7: #{tpu_custom_call.1} parent=1 // loop_footer_branch
      %12 = sbr.rel target = $region3
    $region8: #{tpu_custom_call.1} parent=1 // loop_exit
      _
    %525 = vsyncpa [#allocation3], 1
    %s526 = scalar_lea.sflag [#allocation3], 1
    %527 = vsyncpa %s526, 1

</llo_original>
